<compile_context>
chip_gen: v5e
topology: v5e:2x2
jax: 0.10.0
libtpu: 0.0.40
codegen_flags: <defaults>
</compile_context>

<pallas_src>
import functools

import jax
import jax.numpy as jnp
from jax.experimental import pallas as pl
from jax.experimental.pallas import tpu as pltpu

EMBEDDING_DIM = 50
HIDDEN_LAYER_1 = 50
HIDDEN_LAYER_2 = 50
IN_FEATURES = 28 * 28            # 784
FC4_OUT = 128
NUM_CLASSES = 10
PAD = 128                        # lane-dense padded width for hidden dims / logits


def _round_up(a, m):
    return (a + m - 1) // m * m


def _sublane(dtype):
    # Minimum second-to-last block dim for this dtype (8 for f32, 16 for bf16).
    return max(8, 32 // jnp.dtype(dtype).itemsize)


def _classifier_kernel(x_ref,
                       w1_ref, b1_ref,
                       w2_ref, b2_ref,
                       w3_ref, b3_ref,
                       w4_ref, b4_ref,
                       w5_ref, b5_ref,
                       out_ref, *, matmul_dtype):
    """Whole MLP for one batch tile resident in VMEM.

    Hidden dims and logits are zero-padded to 128 lanes (numerically exact);
    the padded logit columns are masked out of the softmax.  MXU operands are
    cast to `matmul_dtype` in-kernel; accumulation, bias-add, ReLU and the
    log_softmax stay in f32."""
    x = x_ref[...].astype(matmul_dtype)                        # in-kernel cast (VPU)

    def linear(h, w_ref, b_ref):
        y = jnp.dot(h, w_ref[...], preferred_element_type=jnp.float32)   # MXU, f32 acc
        return y + b_ref[...]                                  # bias always f32

    def relu_cast(y):
        return jnp.maximum(y, 0.0).astype(matmul_dtype)

    h = relu_cast(linear(x, w1_ref, b1_ref))                   # (TB, 128)
    h = relu_cast(linear(h, w2_ref, b2_ref))                   # (TB, 128)
    h = relu_cast(linear(h, w3_ref, b3_ref))                   # (TB, 128)
    h = relu_cast(linear(h, w4_ref, b4_ref))                   # (TB, 128)
    logits = linear(h, w5_ref, b5_ref)                         # (TB, 128) f32; cols >= 10 pad

    # Numerically-stable log_softmax over the 10 real classes only (matches
    # F.log_softmax on the last dim).  Mask + reductions must stay in f32:
    # -1e30 overflows to -inf in bf16 and would produce NaN.
    col = jax.lax.broadcasted_iota(jnp.int32, logits.shape, 1)
    valid = col < NUM_CLASSES
    masked = jnp.where(valid, logits, jnp.float32(-1e30))
    m = jnp.max(masked, axis=-1, keepdims=True)
    shifted = masked - m
    lse = jnp.log(jnp.sum(jnp.exp(shifted), axis=-1, keepdims=True))
    # Lane-dense 128-wide store; padded columns written as 0, sliced off in
    # the wrapper.  Cast to out_ref.dtype (bf16 by default) only at the store.
    out_ref[...] = jnp.where(valid, shifted - lse, 0.0).astype(out_ref.dtype)


def _pad_params(params, matmul_dtype):
    """Zero-pad hidden/output dims to 128 and cast weights to matmul_dtype.

    Exact: padded input rows carry zero weights, padded output columns give 0
    (and the padded logit columns are masked in-kernel).  Biases stay f32."""
    def pad_w(w, rows, cols):
        return jnp.pad(w, ((0, rows - w.shape[0]),
                           (0, cols - w.shape[1]))).astype(matmul_dtype)

    def pad_b(b, cols):
        return jnp.pad(b, ((0, 0), (0, cols - b.shape[1]))).astype(jnp.float32)

    return (
        pad_w(params["w1"], IN_FEATURES, PAD), pad_b(params["b1"], PAD),
        pad_w(params["w2"], PAD, PAD),         pad_b(params["b2"], PAD),
        pad_w(params["w3"], PAD, PAD),         pad_b(params["b3"], PAD),
        pad_w(params["w4"], PAD, PAD),         pad_b(params["b4"], PAD),
        pad_w(params["w5"], PAD, PAD),         pad_b(params["b5"], PAD),
    )


def classifier_forward(x, params, *, batch_tile=2048,
                       matmul_dtype=jnp.bfloat16, out_dtype=jnp.bfloat16,
                       vmem_limit_bytes=None):
    """x: (B, 784) in f32 or bf16 (fed to the kernel as-is — no wrapper cast/pad).

    params: dict of transposed weights (in, out) / (1, out) biases.
    matmul_dtype: MXU operand dtype (bf16 recommended on all generations).
    out_dtype:    HBM dtype of the log-probs (bf16 halves the writeback).
    """
    B, F = x.shape
    assert F == IN_FEATURES

    padded = _pad_params(params, matmul_dtype)

    # --- batch tiling ------------------------------------------------------
    # Large tiles amortize the ~0.35us/step pipeline overhead; aim for >= 4
    # grid steps (>= 2 per v7x TensorCore) when B allows so each core keeps
    # its input/output DMAs double-buffered.  No padding of x: the ragged
    # last block is handled by Pallas (rows independent, OOB discarded).
    min_tile = max(_sublane(x.dtype), _sublane(out_dtype))
    batch_tile = max(min_tile, _round_up(batch_tile, min_tile))
    tile = min(batch_tile, _round_up(B, min_tile))
    if B > 4 * min_tile:
        tile = min(tile, max(min_tile, _round_up(pl.cdiv(B, 4), min_tile)))
    grid = (pl.cdiv(B, tile),)

    # 48 MiB fits the default tile=2048 f32-x double buffers + weights +
    # intermediates and leaves headroom on v7x's 64 MiB physical VMEM.
    # On v5e/v6e (128 MiB) pass a larger limit if you push batch_tile >= 4096.
    if vmem_limit_bytes is None:
        vmem_limit_bytes = 48 * 1024 * 1024

    def const_spec(arr):
        # Same full block for every batch tile -> weights stay VMEM-resident.
        return pl.BlockSpec(arr.shape, lambda i: (0, 0))

    out = pl.pallas_call(
        functools.partial(_classifier_kernel, matmul_dtype=matmul_dtype),
        out_shape=jax.ShapeDtypeStruct((B, PAD), out_dtype),
        grid_spec=pltpu.PrefetchScalarGridSpec(
            num_scalar_prefetch=0,
            grid=grid,
            in_specs=[pl.BlockSpec((tile, IN_FEATURES), lambda i: (i, 0))]
                     + [const_spec(a) for a in padded],
            out_specs=pl.BlockSpec((tile, PAD), lambda i: (i, 0)),
        ),
        compiler_params=pltpu.CompilerParams(
            dimension_semantics=("parallel",),
            vmem_limit_bytes=vmem_limit_bytes),
    )(x, *padded)

    return out[:, :NUM_CLASSES]


def init_params(key):
    """Deterministic init mimicking nn.Linear's U(-1/sqrt(fan_in), +1/sqrt(fan_in)).

    Weights are stored transposed: (in_features, out_features)."""
    layer_dims = [
        (IN_FEATURES, HIDDEN_LAYER_1),
        (HIDDEN_LAYER_1, HIDDEN_LAYER_2),
        (HIDDEN_LAYER_2, EMBEDDING_DIM),
        (EMBEDDING_DIM, FC4_OUT),
        (FC4_OUT, NUM_CLASSES),
    ]
    params = {}
    keys = jax.random.split(key, 2 * len(layer_dims))
    for idx, (fan_in, fan_out) in enumerate(layer_dims):
        bound = 1.0 / jnp.sqrt(jnp.float32(fan_in))
        w = jax.random.uniform(keys[2 * idx], (fan_in, fan_out),
                               minval=-bound, maxval=bound, dtype=jnp.float32)
        b = jax.random.uniform(keys[2 * idx + 1], (1, fan_out),
                               minval=-bound, maxval=bound, dtype=jnp.float32)
        params[f"w{idx + 1}"] = w
        params[f"b{idx + 1}"] = b
    return params


def classifier_ref(x, params, matmul_dtype=jnp.float32):
    """Pure-JAX reference emulating the kernel's operand-dtype / f32-accumulate path."""
    h = x
    for i in range(1, 6):
        w = params[f"w{i}"].astype(matmul_dtype)
        y = jnp.dot(h.astype(matmul_dtype), w,
                    preferred_element_type=jnp.float32) + params[f"b{i}"]
        h = jnp.maximum(y, 0.0) if i < 5 else y
    return jax.nn.log_softmax(h, axis=-1)


if __name__ == "__main__":
    key = jax.random.PRNGKey(0)
    pkey, xkey1, xkey2 = jax.random.split(key, 3)
    params = init_params(pkey)

    # 1) Default fast path: bf16 MXU operands, bf16 output, single batch tile.
    B = 16
    x = jax.random.normal(xkey1, (B, IN_FEATURES), dtype=jnp.float32)
    out = jax.block_until_ready(classifier_forward(x, params))
    ref = classifier_ref(x, params, matmul_dtype=jnp.bfloat16)
    assert out.shape == (B, NUM_CLASSES)
    assert jnp.allclose(out.astype(jnp.float32), ref, atol=5e-2, rtol=5e-2), \
        "bf16 path mismatch vs JAX reference"

    # 2) Multi-step grid + ragged last block (no batch padding), default dtypes.
    B2 = 40
    x2 = jax.random.normal(xkey2, (B2, IN_FEATURES), dtype=jnp.float32)
    out2 = jax.block_until_ready(classifier_forward(x2, params, batch_tile=16))
    ref2 = classifier_ref(x2, params, matmul_dtype=jnp.bfloat16)
    assert out2.shape == (B2, NUM_CLASSES)
    assert jnp.allclose(out2.astype(jnp.float32), ref2, atol=5e-2, rtol=5e-2), \
        "ragged/multi-step path mismatch vs JAX reference"

    # 3) Exact-semantics path (f32 operands, f32 output): tight check.
    out3 = jax.block_until_ready(
        classifier_forward(x, params, matmul_dtype=jnp.float32,
                           out_dtype=jnp.float32))
    ref3 = classifier_ref(x, params, matmul_dtype=jnp.float32)
    assert out3.shape == (B, NUM_CLASSES)
    assert jnp.allclose(out3, ref3, atol=1e-4, rtol=1e-4), \
        "f32 path mismatch vs JAX reference"

    print("KERNEL_OK")
</pallas_src>

<mosaic_0001>
module attributes {stable_mosaic.version = 11 : i64} {
  func.func @_classifier_kernel(%arg0: i32, %arg1: memref<16x784xf32, #tpu.memory_space<vmem>>, %arg2: memref<784x128xbf16, #tpu.memory_space<vmem>>, %arg3: memref<1x128xf32, #tpu.memory_space<vmem>>, %arg4: memref<128x128xbf16, #tpu.memory_space<vmem>>, %arg5: memref<1x128xf32, #tpu.memory_space<vmem>>, %arg6: memref<128x128xbf16, #tpu.memory_space<vmem>>, %arg7: memref<1x128xf32, #tpu.memory_space<vmem>>, %arg8: memref<128x128xbf16, #tpu.memory_space<vmem>>, %arg9: memref<1x128xf32, #tpu.memory_space<vmem>>, %arg10: memref<128x128xbf16, #tpu.memory_space<vmem>>, %arg11: memref<1x128xf32, #tpu.memory_space<vmem>>, %arg12: memref<16x128xbf16, #tpu.memory_space<vmem>>) attributes {dimension_semantics = [#tpu.dimension_semantics<parallel>], iteration_bounds = array<i64: 1>, scalar_prefetch = 0 : i64, scratch_operands = 0 : i64, tpu.core_type = #tpu.core_type<tc>, window_params = [{transform_indices = @transform_0, window_bounds = array<i64: 16, 784>}, {pipeline_mode = #tpu.pipeline_mode<synchronous>, transform_indices = @transform_1, window_bounds = array<i64: 784, 128>}, {pipeline_mode = #tpu.pipeline_mode<synchronous>, transform_indices = @transform_2, window_bounds = array<i64: 1, 128>}, {pipeline_mode = #tpu.pipeline_mode<synchronous>, transform_indices = @transform_3, window_bounds = array<i64: 128, 128>}, {pipeline_mode = #tpu.pipeline_mode<synchronous>, transform_indices = @transform_4, window_bounds = array<i64: 1, 128>}, {pipeline_mode = #tpu.pipeline_mode<synchronous>, transform_indices = @transform_5, window_bounds = array<i64: 128, 128>}, {pipeline_mode = #tpu.pipeline_mode<synchronous>, transform_indices = @transform_6, window_bounds = array<i64: 1, 128>}, {pipeline_mode = #tpu.pipeline_mode<synchronous>, transform_indices = @transform_7, window_bounds = array<i64: 128, 128>}, {pipeline_mode = #tpu.pipeline_mode<synchronous>, transform_indices = @transform_8, window_bounds = array<i64: 1, 128>}, {pipeline_mode = #tpu.pipeline_mode<synchronous>, transform_indices = @transform_9, window_bounds = array<i64: 128, 128>}, {pipeline_mode = #tpu.pipeline_mode<synchronous>, transform_indices = @transform_10, window_bounds = array<i64: 1, 128>}, {transform_indices = @transform_11, window_bounds = array<i64: 16, 128>}]} {
    %c0 = arith.constant 0 : index
    %c0_0 = arith.constant 0 : index
    %0 = vector.load %arg1[%c0, %c0_0] : memref<16x784xf32, #tpu.memory_space<vmem>>, vector<16x784xf32>
    %1 = arith.truncf %0 : vector<16x784xf32> to vector<16x784xbf16>
    %c0_1 = arith.constant 0 : index
    %c0_2 = arith.constant 0 : index
    %2 = vector.load %arg2[%c0_1, %c0_2] : memref<784x128xbf16, #tpu.memory_space<vmem>>, vector<784x128xbf16>
    %cst = arith.constant dense<0.000000e+00> : vector<16x128xf32>
    %3 = tpu.matmul %1, %2, %cst {dimension_numbers = #tpu.dot_dimension_numbers<[1], [0], [0], [1], [0, 0, 1, 1], [], []>} : vector<16x784xbf16>, vector<784x128xbf16>, vector<16x128xf32> -> vector<16x128xf32>
    %c0_3 = arith.constant 0 : index
    %c0_4 = arith.constant 0 : index
    %4 = vector.load %arg3[%c0_3, %c0_4] : memref<1x128xf32, #tpu.memory_space<vmem>>, vector<1x128xf32>
    %5 = vector.broadcast %4 : vector<1x128xf32> to vector<16x128xf32>
    %6 = arith.addf %3, %5 : vector<16x128xf32>
    %cst_5 = arith.constant 0.000000e+00 : f32
    %7 = vector.broadcast %cst_5 : f32 to vector<16x128xf32>
    %8 = arith.maximumf %6, %7 : vector<16x128xf32>
    %9 = arith.truncf %8 : vector<16x128xf32> to vector<16x128xbf16>
    %c0_6 = arith.constant 0 : index
    %c0_7 = arith.constant 0 : index
    %10 = vector.load %arg4[%c0_6, %c0_7] : memref<128x128xbf16, #tpu.memory_space<vmem>>, vector<128x128xbf16>
    %cst_8 = arith.constant dense<0.000000e+00> : vector<16x128xf32>
    %11 = tpu.matmul %9, %10, %cst_8 {dimension_numbers = #tpu.dot_dimension_numbers<[1], [0], [0], [1], [0, 0, 1, 1], [], []>} : vector<16x128xbf16>, vector<128x128xbf16>, vector<16x128xf32> -> vector<16x128xf32>
    %c0_9 = arith.constant 0 : index
    %c0_10 = arith.constant 0 : index
    %12 = vector.load %arg5[%c0_9, %c0_10] : memref<1x128xf32, #tpu.memory_space<vmem>>, vector<1x128xf32>
    %13 = vector.broadcast %12 : vector<1x128xf32> to vector<16x128xf32>
    %14 = arith.addf %11, %13 : vector<16x128xf32>
    %cst_11 = arith.constant 0.000000e+00 : f32
    %15 = vector.broadcast %cst_11 : f32 to vector<16x128xf32>
    %16 = arith.maximumf %14, %15 : vector<16x128xf32>
    %17 = arith.truncf %16 : vector<16x128xf32> to vector<16x128xbf16>
    %c0_12 = arith.constant 0 : index
    %c0_13 = arith.constant 0 : index
    %18 = vector.load %arg6[%c0_12, %c0_13] : memref<128x128xbf16, #tpu.memory_space<vmem>>, vector<128x128xbf16>
    %cst_14 = arith.constant dense<0.000000e+00> : vector<16x128xf32>
    %19 = tpu.matmul %17, %18, %cst_14 {dimension_numbers = #tpu.dot_dimension_numbers<[1], [0], [0], [1], [0, 0, 1, 1], [], []>} : vector<16x128xbf16>, vector<128x128xbf16>, vector<16x128xf32> -> vector<16x128xf32>
    %c0_15 = arith.constant 0 : index
    %c0_16 = arith.constant 0 : index
    %20 = vector.load %arg7[%c0_15, %c0_16] : memref<1x128xf32, #tpu.memory_space<vmem>>, vector<1x128xf32>
    %21 = vector.broadcast %20 : vector<1x128xf32> to vector<16x128xf32>
    %22 = arith.addf %19, %21 : vector<16x128xf32>
    %cst_17 = arith.constant 0.000000e+00 : f32
    %23 = vector.broadcast %cst_17 : f32 to vector<16x128xf32>
    %24 = arith.maximumf %22, %23 : vector<16x128xf32>
    %25 = arith.truncf %24 : vector<16x128xf32> to vector<16x128xbf16>
    %c0_18 = arith.constant 0 : index
    %c0_19 = arith.constant 0 : index
    %26 = vector.load %arg8[%c0_18, %c0_19] : memref<128x128xbf16, #tpu.memory_space<vmem>>, vector<128x128xbf16>
    %cst_20 = arith.constant dense<0.000000e+00> : vector<16x128xf32>
    %27 = tpu.matmul %25, %26, %cst_20 {dimension_numbers = #tpu.dot_dimension_numbers<[1], [0], [0], [1], [0, 0, 1, 1], [], []>} : vector<16x128xbf16>, vector<128x128xbf16>, vector<16x128xf32> -> vector<16x128xf32>
    %c0_21 = arith.constant 0 : index
    %c0_22 = arith.constant 0 : index
    %28 = vector.load %arg9[%c0_21, %c0_22] : memref<1x128xf32, #tpu.memory_space<vmem>>, vector<1x128xf32>
    %29 = vector.broadcast %28 : vector<1x128xf32> to vector<16x128xf32>
    %30 = arith.addf %27, %29 : vector<16x128xf32>
    %cst_23 = arith.constant 0.000000e+00 : f32
    %31 = vector.broadcast %cst_23 : f32 to vector<16x128xf32>
    %32 = arith.maximumf %30, %31 : vector<16x128xf32>
    %33 = arith.truncf %32 : vector<16x128xf32> to vector<16x128xbf16>
    %c0_24 = arith.constant 0 : index
    %c0_25 = arith.constant 0 : index
    %34 = vector.load %arg10[%c0_24, %c0_25] : memref<128x128xbf16, #tpu.memory_space<vmem>>, vector<128x128xbf16>
    %cst_26 = arith.constant dense<0.000000e+00> : vector<16x128xf32>
    %35 = tpu.matmul %33, %34, %cst_26 {dimension_numbers = #tpu.dot_dimension_numbers<[1], [0], [0], [1], [0, 0, 1, 1], [], []>} : vector<16x128xbf16>, vector<128x128xbf16>, vector<16x128xf32> -> vector<16x128xf32>
    %c0_27 = arith.constant 0 : index
    %c0_28 = arith.constant 0 : index
    %36 = vector.load %arg11[%c0_27, %c0_28] : memref<1x128xf32, #tpu.memory_space<vmem>>, vector<1x128xf32>
    %37 = vector.broadcast %36 : vector<1x128xf32> to vector<16x128xf32>
    %38 = arith.addf %35, %37 : vector<16x128xf32>
    %39 = tpu.iota {dimensions = array<i32: 1>} : vector<16x128xi32>
    %c10_i32 = arith.constant 10 : i32
    %40 = vector.broadcast %c10_i32 : i32 to vector<16x128xi32>
    %41 = arith.cmpi slt, %39, %40 : vector<16x128xi32>
    %cst_29 = arith.constant -1.000000e+30 : f32
    %42 = vector.broadcast %cst_29 : f32 to vector<16x128xf32>
    %43 = arith.select %41, %38, %42 : vector<16x128xi1>, vector<16x128xf32>
    %cst_30 = arith.constant dense<0xFF800000> : vector<16xf32>
    %44 = vector.multi_reduction <maximumf>, %43, %cst_30 [1] : vector<16x128xf32> to vector<16xf32>
    %45 = vector.shape_cast %44 : vector<16xf32> to vector<16x1xf32>
    %46 = vector.broadcast %45 : vector<16x1xf32> to vector<16x128xf32>
    %47 = arith.subf %43, %46 : vector<16x128xf32>
    %48 = math.exp %47 : vector<16x128xf32>
    %cst_31 = arith.constant dense<0.000000e+00> : vector<16xf32>
    %49 = vector.multi_reduction <add>, %48, %cst_31 [1] : vector<16x128xf32> to vector<16xf32>
    %50 = vector.shape_cast %49 : vector<16xf32> to vector<16x1xf32>
    %51 = math.log %50 : vector<16x1xf32>
    %52 = vector.broadcast %51 : vector<16x1xf32> to vector<16x128xf32>
    %53 = arith.subf %47, %52 : vector<16x128xf32>
    %cst_32 = arith.constant 0.000000e+00 : f32
    %54 = vector.broadcast %cst_32 : f32 to vector<16x128xf32>
    %55 = arith.select %41, %53, %54 : vector<16x128xi1>, vector<16x128xf32>
    %56 = arith.truncf %55 : vector<16x128xf32> to vector<16x128xbf16>
    %c0_33 = arith.constant 0 : index
    %c0_34 = arith.constant 0 : index
    %57 = vector.load %arg12[%c0_33, %c0_34] : memref<16x128xbf16, #tpu.memory_space<vmem>>, vector<16x128xbf16>
    tpu.vector_store %arg12[%c0_33, %c0_34], %56 {strides = array<i32>} : memref<16x128xbf16, #tpu.memory_space<vmem>>, vector<16x128xbf16>,
    return
  }
  func.func @transform_0(%arg0: i32) -> (i32, i32) {
    %c0_i32 = arith.constant 0 : i32
    %c0_i32_0 = arith.constant 0 : i32
    return %arg0, %c0_i32 : i32, i32
  }
  func.func @transform_1(%arg0: i32) -> (i32, i32) {
    %c0_i32 = arith.constant 0 : i32
    %c0_i32_0 = arith.constant 0 : i32
    %c0_i32_1 = arith.constant 0 : i32
    return %c0_i32, %c0_i32_0 : i32, i32
  }
  func.func @transform_2(%arg0: i32) -> (i32, i32) {
    %c0_i32 = arith.constant 0 : i32
    %c0_i32_0 = arith.constant 0 : i32
    %c0_i32_1 = arith.constant 0 : i32
    return %c0_i32, %c0_i32_0 : i32, i32
  }
  func.func @transform_3(%arg0: i32) -> (i32, i32) {
    %c0_i32 = arith.constant 0 : i32
    %c0_i32_0 = arith.constant 0 : i32
    %c0_i32_1 = arith.constant 0 : i32
    return %c0_i32, %c0_i32_0 : i32, i32
  }
  func.func @transform_4(%arg0: i32) -> (i32, i32) {
    %c0_i32 = arith.constant 0 : i32
    %c0_i32_0 = arith.constant 0 : i32
    %c0_i32_1 = arith.constant 0 : i32
    return %c0_i32, %c0_i32_0 : i32, i32
  }
  func.func @transform_5(%arg0: i32) -> (i32, i32) {
    %c0_i32 = arith.constant 0 : i32
    %c0_i32_0 = arith.constant 0 : i32
    %c0_i32_1 = arith.constant 0 : i32
    return %c0_i32, %c0_i32_0 : i32, i32
  }
  func.func @transform_6(%arg0: i32) -> (i32, i32) {
    %c0_i32 = arith.constant 0 : i32
    %c0_i32_0 = arith.constant 0 : i32
    %c0_i32_1 = arith.constant 0 : i32
    return %c0_i32, %c0_i32_0 : i32, i32
  }
  func.func @transform_7(%arg0: i32) -> (i32, i32) {
    %c0_i32 = arith.constant 0 : i32
    %c0_i32_0 = arith.constant 0 : i32
    %c0_i32_1 = arith.constant 0 : i32
    return %c0_i32, %c0_i32_0 : i32, i32
  }
  func.func @transform_8(%arg0: i32) -> (i32, i32) {
    %c0_i32 = arith.constant 0 : i32
    %c0_i32_0 = arith.constant 0 : i32
    %c0_i32_1 = arith.constant 0 : i32
    return %c0_i32, %c0_i32_0 : i32, i32
  }
  func.func @transform_9(%arg0: i32) -> (i32, i32) {
    %c0_i32 = arith.constant 0 : i32
    %c0_i32_0 = arith.constant 0 : i32
    %c0_i32_1 = arith.constant 0 : i32
    return %c0_i32, %c0_i32_0 : i32, i32
  }
  func.func @transform_10(%arg0: i32) -> (i32, i32) {
    %c0_i32 = arith.constant 0 : i32
    %c0_i32_0 = arith.constant 0 : i32
    %c0_i32_1 = arith.constant 0 : i32
    return %c0_i32, %c0_i32_0 : i32, i32
  }
  func.func @transform_11(%arg0: i32) -> (i32, i32) {
    %c0_i32 = arith.constant 0 : i32
    %c0_i32_0 = arith.constant 0 : i32
    return %arg0, %c0_i32 : i32, i32
  }
}

</mosaic_0001>

<llo_original>
// kernel: tpu_custom_call.1
$region0: #{tpu_custom_call.1}
  #allocation0 [shape = 'u32[]', space=smem, size = 0x4, offset = 0x4, fixed_abs, tag = 'smem constant byte address 0x4 - core index']
  #allocation1 [shape = 'u32[72,128]{1,0:T(1,128)}', space=vmem, size = 0x9000, scoped, tag = 'internal scratch']
  %s0 = inlined_call_operand.hbm [shape: f32[16,784], index: 0, kind: input, shape index: {}]
  %s1 = inlined_call_operand.hbm [shape: bf16[784,128], index: 1, kind: input, shape index: {}]
  %s2 = inlined_call_operand.vmem [shape: f32[1,128], index: 2, kind: input, shape index: {}]
  %s3 = inlined_call_operand.hbm [shape: bf16[128,128], index: 3, kind: input, shape index: {}]
  %s4 = inlined_call_operand.vmem [shape: f32[1,128], index: 4, kind: input, shape index: {}]
  %s5 = inlined_call_operand.hbm [shape: bf16[128,128], index: 5, kind: input, shape index: {}]
  %s6 = inlined_call_operand.vmem [shape: f32[1,128], index: 6, kind: input, shape index: {}]
  %s7 = inlined_call_operand.hbm [shape: bf16[128,128], index: 7, kind: input, shape index: {}]
  %s8 = inlined_call_operand.vmem [shape: f32[1,128], index: 8, kind: input, shape index: {}]
  %s9 = inlined_call_operand.hbm [shape: bf16[128,128], index: 9, kind: input, shape index: {}]
  %s10 = inlined_call_operand.vmem [shape: f32[1,128], index: 10, kind: input, shape index: {}]
  %s11 = inlined_call_operand.hbm [shape: bf16[16,128], index: 11, kind: output, shape index: {}]
  %s12 = sld [smem:[#allocation0]]
  $region78: #{tpu_custom_call.1} parent=0
    _
  %s14 = ssub.s32 1, %s12
  %s15 = scalar_select 0, %s14, %s12
  $region1: #{tpu_custom_call.1} parent=0
    #allocation2 [shape = 'u8[57344]{0}', space=vmem, size = 0xe000, scoped, tag = 'input window, operand 0, single buffered']
    #allocation3 [shape = 's32[1]{0}', space=sflag, size = 0x4, scoped, tag = 'scoped memory for tpu_custom_call.1']
    #allocation4 [shape = 's32[1]{0}', space=sflag, size = 0x4, scoped, tag = 'scoped memory for tpu_custom_call.1']
    #allocation5 [shape = 'u8[200704]{0}', space=vmem, size = 0x31000, scoped, tag = 'input window, operand 1, single buffered']
    #allocation6 [shape = 's32[1]{0}', space=sflag, size = 0x4, scoped, tag = 'scoped memory for tpu_custom_call.1']
    #allocation7 [shape = 'u8[32768]{0}', space=vmem, size = 0x8000, scoped, tag = 'input window, operand 3, single buffered']
    #allocation8 [shape = 'u8[32768]{0}', space=vmem, size = 0x8000, scoped, tag = 'input window, operand 5, single buffered']
    #allocation9 [shape = 's32[1]{0}', space=sflag, size = 0x4, scoped, tag = 'scoped memory for tpu_custom_call.1']
    #allocation10 [shape = 'u8[32768]{0}', space=vmem, size = 0x8000, scoped, tag = 'input window, operand 7, single buffered']
    #allocation11 [shape = 'u8[32768]{0}', space=vmem, size = 0x8000, scoped, tag = 'input window, operand 9, single buffered']
    #allocation12 [shape = 's32[1]{0}', space=sflag, size = 0x4, scoped, tag = 'scoped memory for tpu_custom_call.1']
    #allocation13 [shape = 'u8[4096]{0}', space=vmem, size = 0x1000, scoped, tag = 'output window, operand 0, single buffered']
    %16 = vsyncpa [#allocation3], 0
    %17 = vsyncpa [#allocation6], 0
    %18 = vsyncpa [#allocation9], 0
    %19 = vsyncpa [#allocation12], 0
    %20 = vsyncpa [#allocation4], 0
    // Predicated region
    $region2: #{tpu_custom_call.1} parent=1 // pred_check
      _
    $region3: #{tpu_custom_call.1} parent=1 // pred_check_branch
      %22 = sbr.rel (0) target = $region5
    $region4: #{tpu_custom_call.1} parent=1 // pred_region
      %24 = vsyncadd [#allocation3], 0
      %s25 = sshll.u32 %s0, 4
      %s26 = int_to_ptr.hbm [resolvable:$true] %s25
      %s27 = sshll.u32 [#allocation2], 4
      %s28 = int_to_ptr.vmem [resolvable:$true] %s27
      %33 = dma.hbm_to_vmem [thread:$0]  %s26, 1792, %s28, [#allocation3], 896, 896, 56
    $region5: #{tpu_custom_call.1} parent=1 // pred_fallthru
      _
    // Predicated region
    $region6: #{tpu_custom_call.1} parent=1 // pred_check
      _
    $region7: #{tpu_custom_call.1} parent=1 // pred_check_branch
      %35 = sbr.rel (0) target = $region9
    $region8: #{tpu_custom_call.1} parent=1 // pred_region
      %37 = vsyncadd [#allocation6], 0
      %s38 = sshll.u32 %s1, 4
      %s39 = int_to_ptr.hbm [resolvable:$true] %s38
      %s40 = sshll.u32 [#allocation5], 4
      %s41 = int_to_ptr.vmem [resolvable:$true] %s40
      %46 = dma.hbm_to_vmem [thread:$0]  %s39, 6272, %s41, [#allocation6], 64, 64, 4
    $region9: #{tpu_custom_call.1} parent=1 // pred_fallthru
      _
    // Predicated region
    $region10: #{tpu_custom_call.1} parent=1 // pred_check
      _
    $region11: #{tpu_custom_call.1} parent=1 // pred_check_branch
      %48 = sbr.rel (0) target = $region13
    $region12: #{tpu_custom_call.1} parent=1 // pred_region
      _
    $region13: #{tpu_custom_call.1} parent=1 // pred_fallthru
      _
    // Predicated region
    $region14: #{tpu_custom_call.1} parent=1 // pred_check
      _
    $region15: #{tpu_custom_call.1} parent=1 // pred_check_branch
      %50 = sbr.rel (0) target = $region17
    $region16: #{tpu_custom_call.1} parent=1 // pred_region
      %52 = vsyncadd [#allocation6], 0
      %s53 = sshll.u32 %s3, 4
      %s54 = int_to_ptr.hbm [resolvable:$true] %s53
      %s55 = sshll.u32 [#allocation7], 4
      %s56 = int_to_ptr.vmem [resolvable:$true] %s55
      %61 = dma.hbm_to_vmem [thread:$0]  %s54, 1024, %s56, [#allocation6], 64, 64, 4
    $region17: #{tpu_custom_call.1} parent=1 // pred_fallthru
      _
    // Predicated region
    $region18: #{tpu_custom_call.1} parent=1 // pred_check
      _
    $region19: #{tpu_custom_call.1} parent=1 // pred_check_branch
      %63 = sbr.rel (0) target = $region21
    $region20: #{tpu_custom_call.1} parent=1 // pred_region
      _
    $region21: #{tpu_custom_call.1} parent=1 // pred_fallthru
      _
    // Predicated region
    $region22: #{tpu_custom_call.1} parent=1 // pred_check
      _
    $region23: #{tpu_custom_call.1} parent=1 // pred_check_branch
      %65 = sbr.rel (0) target = $region25
    $region24: #{tpu_custom_call.1} parent=1 // pred_region
      %67 = vsyncadd [#allocation9], 0
      %s68 = sshll.u32 %s5, 4
      %s69 = int_to_ptr.hbm [resolvable:$true] %s68
      %s70 = sshll.u32 [#allocation8], 4
      %s71 = int_to_ptr.vmem [resolvable:$true] %s70
      %76 = dma.hbm_to_vmem [thread:$0]  %s69, 1024, %s71, [#allocation9], 64, 64, 4
    $region25: #{tpu_custom_call.1} parent=1 // pred_fallthru
      _
    // Predicated region
    $region26: #{tpu_custom_call.1} parent=1 // pred_check
      _
    $region27: #{tpu_custom_call.1} parent=1 // pred_check_branch
      %78 = sbr.rel (0) target = $region29
    $region28: #{tpu_custom_call.1} parent=1 // pred_region
      _
    $region29: #{tpu_custom_call.1} parent=1 // pred_fallthru
      _
    // Predicated region
    $region30: #{tpu_custom_call.1} parent=1 // pred_check
      _
    $region31: #{tpu_custom_call.1} parent=1 // pred_check_branch
      %80 = sbr.rel (0) target = $region33
    $region32: #{tpu_custom_call.1} parent=1 // pred_region
      %82 = vsyncadd [#allocation9], 0
      %s83 = sshll.u32 %s7, 4
      %s84 = int_to_ptr.hbm [resolvable:$true] %s83
      %s85 = sshll.u32 [#allocation10], 4
      %s86 = int_to_ptr.vmem [resolvable:$true] %s85
      %91 = dma.hbm_to_vmem [thread:$0]  %s84, 1024, %s86, [#allocation9], 64, 64, 4
    $region33: #{tpu_custom_call.1} parent=1 // pred_fallthru
      _
    // Predicated region
    $region34: #{tpu_custom_call.1} parent=1 // pred_check
      _
    $region35: #{tpu_custom_call.1} parent=1 // pred_check_branch
      %93 = sbr.rel (0) target = $region37
    $region36: #{tpu_custom_call.1} parent=1 // pred_region
      _
    $region37: #{tpu_custom_call.1} parent=1 // pred_fallthru
      _
    // Predicated region
    $region38: #{tpu_custom_call.1} parent=1 // pred_check
      _
    $region39: #{tpu_custom_call.1} parent=1 // pred_check_branch
      %95 = sbr.rel (0) target = $region41
    $region40: #{tpu_custom_call.1} parent=1 // pred_region
      %97 = vsyncadd [#allocation12], 0
      %s98 = sshll.u32 %s9, 4
      %s99 = int_to_ptr.hbm [resolvable:$true] %s98
      %s100 = sshll.u32 [#allocation11], 4
      %s101 = int_to_ptr.vmem [resolvable:$true] %s100
      %106 = dma.hbm_to_vmem [thread:$0]  %s99, 1024, %s101, [#allocation12], 64, 64, 4
    $region41: #{tpu_custom_call.1} parent=1 // pred_fallthru
      _
    // Predicated region
    $region42: #{tpu_custom_call.1} parent=1 // pred_check
      _
    $region43: #{tpu_custom_call.1} parent=1 // pred_check_branch
      %108 = sbr.rel (0) target = $region45
    $region44: #{tpu_custom_call.1} parent=1 // pred_region
      _
    $region45: #{tpu_custom_call.1} parent=1 // pred_fallthru
      _
    // Predicated region
    $region46: #{tpu_custom_call.1} parent=1 // pred_check
      _
    $region47: #{tpu_custom_call.1} parent=1 // pred_check_branch
      %110 = sbr.rel (0) target = $region49
    $region48: #{tpu_custom_call.1} parent=1 // pred_region
      %112 = dma.done [#allocation3], 1792
    $region49: #{tpu_custom_call.1} parent=1 // pred_fallthru
      _
    // Predicated region
    $region50: #{tpu_custom_call.1} parent=1 // pred_check
      _
    $region51: #{tpu_custom_call.1} parent=1 // pred_check_branch
      %114 = sbr.rel (0) target = $region53
    $region52: #{tpu_custom_call.1} parent=1 // pred_region
      %116 = dma.done [#allocation6], 6272
    $region53: #{tpu_custom_call.1} parent=1 // pred_fallthru
      _
    // Predicated region
    $region54: #{tpu_custom_call.1} parent=1 // pred_check
      _
    $region55: #{tpu_custom_call.1} parent=1 // pred_check_branch
      %118 = sbr.rel (0) target = $region57
    $region56: #{tpu_custom_call.1} parent=1 // pred_region
      %120 = dma.done [#allocation6], 1024
    $region57: #{tpu_custom_call.1} parent=1 // pred_fallthru
      _
    // Predicated region
    $region58: #{tpu_custom_call.1} parent=1 // pred_check
      _
    $region59: #{tpu_custom_call.1} parent=1 // pred_check_branch
      %122 = sbr.rel (0) target = $region61
    $region60: #{tpu_custom_call.1} parent=1 // pred_region
      %124 = dma.done [#allocation9], 1024
    $region61: #{tpu_custom_call.1} parent=1 // pred_fallthru
      _
    // Predicated region
    $region62: #{tpu_custom_call.1} parent=1 // pred_check
      _
    $region63: #{tpu_custom_call.1} parent=1 // pred_check_branch
      %126 = sbr.rel (0) target = $region65
    $region64: #{tpu_custom_call.1} parent=1 // pred_region
      %128 = dma.done [#allocation9], 1024
    $region65: #{tpu_custom_call.1} parent=1 // pred_fallthru
      _
    // Predicated region
    $region66: #{tpu_custom_call.1} parent=1 // pred_check
      _
    $region67: #{tpu_custom_call.1} parent=1 // pred_check_branch
      %130 = sbr.rel (0) target = $region69
    $region68: #{tpu_custom_call.1} parent=1 // pred_region
      %132 = dma.done [#allocation12], 1024
    $region69: #{tpu_custom_call.1} parent=1 // pred_fallthru
      _
    %v134 = vld [vmem:[#allocation2] sm:$0xff]
    %v135 = vld [vmem:[#allocation2 + $0x8] sm:$0xff]
    %v136 = vld [vmem:[#allocation2 + $0x10] sm:$0xff]
    %v137 = vld [vmem:[#allocation2 + $0x18] sm:$0xff]
    %v138 = vld [vmem:[#allocation2 + $0x20] sm:$0xff]
    %v139 = vld [vmem:[#allocation2 + $0x28] sm:$0xff]
    %v140 = vld [vmem:[#allocation2 + $0x30] sm:$0xff]
    %v141 = vld [vmem:[#allocation2 + $0x38] sm:$0xff]
    %v142 = vld [vmem:[#allocation2 + $0x40] sm:$0xff]
    %v143 = vld [vmem:[#allocation2 + $0x48] sm:$0xff]
    %v144 = vld [vmem:[#allocation2 + $0x50] sm:$0xff]
    %v145 = vld [vmem:[#allocation2 + $0x58] sm:$0xff]
    %v146 = vld [vmem:[#allocation2 + $0x60] sm:$0xff]
    %v147 = vld [vmem:[#allocation2 + $0x68] sm:$0xff]
    %v148 = vpack.c.bf16 %v141, %v134
    %v149 = vpack.c.bf16 %v142, %v135
    %v150 = vpack.c.bf16 %v143, %v136
    %v151 = vpack.c.bf16 %v144, %v137
    %v152 = vpack.c.bf16 %v145, %v138
    %v153 = vpack.c.bf16 %v146, %v139
    %v154 = vpack.c.bf16 %v147, %v140
    %v155 = vld [vmem:[#allocation5] sm:$0xf]
    %v156 = vld [vmem:[#allocation5 + $0x4] sm:$0xf]
    %v157 = vld [vmem:[#allocation5 + $0x8] sm:$0xf]
    %v158 = vld [vmem:[#allocation5 + $0xc] sm:$0xf]
    %v159 = vld [vmem:[#allocation5 + $0x10] sm:$0xf]
    %v160 = vld [vmem:[#allocation5 + $0x14] sm:$0xf]
    %v161 = vld [vmem:[#allocation5 + $0x18] sm:$0xf]
    %v162 = vld [vmem:[#allocation5 + $0x1c] sm:$0xf]
    %v163 = vld [vmem:[#allocation5 + $0x20] sm:$0xf]
    %v164 = vld [vmem:[#allocation5 + $0x24] sm:$0xf]
    %v165 = vld [vmem:[#allocation5 + $0x28] sm:$0xf]
    %v166 = vld [vmem:[#allocation5 + $0x2c] sm:$0xf]
    %v167 = vld [vmem:[#allocation5 + $0x30] sm:$0xf]
    %v168 = vld [vmem:[#allocation5 + $0x34] sm:$0xf]
    %v169 = vld [vmem:[#allocation5 + $0x38] sm:$0xf]
    %v170 = vld [vmem:[#allocation5 + $0x3c] sm:$0xf]
    %v171 = vld [vmem:[#allocation5 + $0x40] sm:$0xf]
    %v172 = vld [vmem:[#allocation5 + $0x44] sm:$0xf]
    %v173 = vld [vmem:[#allocation5 + $0x48] sm:$0xf]
    %v174 = vld [vmem:[#allocation5 + $0x4c] sm:$0xf]
    %v175 = vld [vmem:[#allocation5 + $0x50] sm:$0xf]
    %v176 = vld [vmem:[#allocation5 + $0x54] sm:$0xf]
    %v177 = vld [vmem:[#allocation5 + $0x58] sm:$0xf]
    %v178 = vld [vmem:[#allocation5 + $0x5c] sm:$0xf]
    %v179 = vld [vmem:[#allocation5 + $0x60] sm:$0xf]
    %v180 = vld [vmem:[#allocation5 + $0x64] sm:$0xf]
    %v181 = vld [vmem:[#allocation5 + $0x68] sm:$0xf]
    %v182 = vld [vmem:[#allocation5 + $0x6c] sm:$0xf]
    %v183 = vld [vmem:[#allocation5 + $0x70] sm:$0xf]
    %v184 = vld [vmem:[#allocation5 + $0x74] sm:$0xf]
    %v185 = vld [vmem:[#allocation5 + $0x78] sm:$0xf]
    %v186 = vld [vmem:[#allocation5 + $0x7c] sm:$0xf]
    %v187 = vld [vmem:[#allocation5 + $0x80] sm:$0xf]
    %v188 = vld [vmem:[#allocation5 + $0x84] sm:$0xf]
    %v189 = vld [vmem:[#allocation5 + $0x88] sm:$0xf]
    %v190 = vld [vmem:[#allocation5 + $0x8c] sm:$0xf]
    %v191 = vld [vmem:[#allocation5 + $0x90] sm:$0xf]
    %v192 = vld [vmem:[#allocation5 + $0x94] sm:$0xf]
    %v193 = vld [vmem:[#allocation5 + $0x98] sm:$0xf]
    %v194 = vld [vmem:[#allocation5 + $0x9c] sm:$0xf]
    %v195 = vld [vmem:[#allocation5 + $0xa0] sm:$0xf]
    %v196 = vld [vmem:[#allocation5 + $0xa4] sm:$0xf]
    %v197 = vld [vmem:[#allocation5 + $0xa8] sm:$0xf]
    %v198 = vld [vmem:[#allocation5 + $0xac] sm:$0xf]
    %v199 = vld [vmem:[#allocation5 + $0xb0] sm:$0xf]
    %v200 = vld [vmem:[#allocation5 + $0xb4] sm:$0xf]
    %v201 = vld [vmem:[#allocation5 + $0xb8] sm:$0xf]
    %v202 = vld [vmem:[#allocation5 + $0xbc] sm:$0xf]
    %v203 = vld [vmem:[#allocation5 + $0xc0] sm:$0xf]
    %v204 = vld [vmem:[#allocation5 + $0xc4] sm:$0xf]
    %v205 = vld [vmem:[#allocation5 + $0xc8] sm:$0xf]
    %v206 = vld [vmem:[#allocation5 + $0xcc] sm:$0xf]
    %v207 = vld [vmem:[#allocation5 + $0xd0] sm:$0xf]
    %v208 = vld [vmem:[#allocation5 + $0xd4] sm:$0xf]
    %v209 = vld [vmem:[#allocation5 + $0xd8] sm:$0xf]
    %v210 = vld [vmem:[#allocation5 + $0xdc] sm:$0xf]
    %v211 = vld [vmem:[#allocation5 + $0xe0] sm:$0xf]
    %v212 = vld [vmem:[#allocation5 + $0xe4] sm:$0xf]
    %v213 = vld [vmem:[#allocation5 + $0xe8] sm:$0xf]
    %v214 = vld [vmem:[#allocation5 + $0xec] sm:$0xf]
    %v215 = vld [vmem:[#allocation5 + $0xf0] sm:$0xf]
    %v216 = vld [vmem:[#allocation5 + $0xf4] sm:$0xf]
    %v217 = vld [vmem:[#allocation5 + $0xf8] sm:$0xf]
    %v218 = vld [vmem:[#allocation5 + $0xfc] sm:$0xf]
    %v219 = vld [vmem:[#allocation5 + $0x100] sm:$0xf]
    %v220 = vld [vmem:[#allocation5 + $0x104] sm:$0xf]
    %v221 = vld [vmem:[#allocation5 + $0x108] sm:$0xf]
    %v222 = vld [vmem:[#allocation5 + $0x10c] sm:$0xf]
    %v223 = vld [vmem:[#allocation5 + $0x110] sm:$0xf]
    %v224 = vld [vmem:[#allocation5 + $0x114] sm:$0xf]
    %v225 = vld [vmem:[#allocation5 + $0x118] sm:$0xf]
    %v226 = vld [vmem:[#allocation5 + $0x11c] sm:$0xf]
    %v227 = vld [vmem:[#allocation5 + $0x120] sm:$0xf]
    %v228 = vld [vmem:[#allocation5 + $0x124] sm:$0xf]
    %v229 = vld [vmem:[#allocation5 + $0x128] sm:$0xf]
    %v230 = vld [vmem:[#allocation5 + $0x12c] sm:$0xf]
    %v231 = vld [vmem:[#allocation5 + $0x130] sm:$0xf]
    %v232 = vld [vmem:[#allocation5 + $0x134] sm:$0xf]
    %v233 = vld [vmem:[#allocation5 + $0x138] sm:$0xf]
    %v234 = vld [vmem:[#allocation5 + $0x13c] sm:$0xf]
    %v235 = vld [vmem:[#allocation5 + $0x140] sm:$0xf]
    %v236 = vld [vmem:[#allocation5 + $0x144] sm:$0xf]
    %v237 = vld [vmem:[#allocation5 + $0x148] sm:$0xf]
    %v238 = vld [vmem:[#allocation5 + $0x14c] sm:$0xf]
    %v239 = vld [vmem:[#allocation5 + $0x150] sm:$0xf]
    %v240 = vld [vmem:[#allocation5 + $0x154] sm:$0xf]
    %v241 = vld [vmem:[#allocation5 + $0x158] sm:$0xf]
    %v242 = vld [vmem:[#allocation5 + $0x15c] sm:$0xf]
    %v243 = vld [vmem:[#allocation5 + $0x160] sm:$0xf]
    %v244 = vld [vmem:[#allocation5 + $0x164] sm:$0xf]
    %v245 = vld [vmem:[#allocation5 + $0x168] sm:$0xf]
    %v246 = vld [vmem:[#allocation5 + $0x16c] sm:$0xf]
    %v247 = vld [vmem:[#allocation5 + $0x170] sm:$0xf]
    %v248 = vld [vmem:[#allocation5 + $0x174] sm:$0xf]
    %v249 = vld [vmem:[#allocation5 + $0x178] sm:$0xf]
    %v250 = vld [vmem:[#allocation5 + $0x17c] sm:$0xf]
    %v251 = vld [vmem:[#allocation5 + $0x180] sm:$0xf]
    %v252 = vld [vmem:[#allocation5 + $0x184] sm:$0xf]
    %v253 = vld [vmem:[%s2] sm:$0x1]
    %v255 = vperm.slane %v253, 0
    %v355 = vunpack.c.l.b16 %v155
    %v356 = vunpack.c.l.b16 %v156
    %v357 = vunpack.c.l.b16 %v157
    %v358 = vunpack.c.l.b16 %v158
    %v359 = vunpack.c.l.b16 %v159
    %v360 = vunpack.c.l.b16 %v160
    %v361 = vunpack.c.l.b16 %v161
    %v362 = vunpack.c.l.b16 %v162
    %v363 = vunpack.c.l.b16 %v163
    %v364 = vunpack.c.l.b16 %v164
    %v365 = vunpack.c.l.b16 %v165
    %v366 = vunpack.c.l.b16 %v166
    %v367 = vunpack.c.l.b16 %v167
    %v368 = vunpack.c.l.b16 %v168
    %v369 = vunpack.c.l.b16 %v169
    %v370 = vunpack.c.l.b16 %v170
    %v371 = vunpack.c.l.b16 %v171
    %v372 = vunpack.c.l.b16 %v172
    %v373 = vunpack.c.l.b16 %v173
    %v374 = vunpack.c.l.b16 %v174
    %v375 = vunpack.c.l.b16 %v175
    %v376 = vunpack.c.l.b16 %v176
    %v377 = vunpack.c.l.b16 %v177
    %v378 = vunpack.c.l.b16 %v178
    %v379 = vunpack.c.l.b16 %v179
    %v380 = vunpack.c.l.b16 %v180
    %v381 = vunpack.c.l.b16 %v181
    %v382 = vunpack.c.l.b16 %v182
    %v383 = vunpack.c.l.b16 %v183
    %v384 = vunpack.c.l.b16 %v184
    %v385 = vunpack.c.l.b16 %v185
    %v386 = vunpack.c.l.b16 %v186
    %v387 = vunpack.c.l.b16 %v187
    %v388 = vunpack.c.l.b16 %v188
    %v389 = vunpack.c.l.b16 %v189
    %v390 = vunpack.c.l.b16 %v190
    %v391 = vunpack.c.l.b16 %v191
    %v392 = vunpack.c.l.b16 %v192
    %v393 = vunpack.c.l.b16 %v193
    %v394 = vunpack.c.l.b16 %v194
    %v395 = vunpack.c.l.b16 %v195
    %v396 = vunpack.c.l.b16 %v196
    %v397 = vunpack.c.l.b16 %v197
    %v398 = vunpack.c.l.b16 %v198
    %v399 = vunpack.c.l.b16 %v199
    %v400 = vunpack.c.l.b16 %v200
    %v401 = vunpack.c.l.b16 %v201
    %v402 = vunpack.c.l.b16 %v202
    %v403 = vunpack.c.l.b16 %v203
    %v404 = vunpack.c.l.b16 %v204
    %v405 = vunpack.c.l.b16 %v205
    %v406 = vunpack.c.l.b16 %v206
    %v407 = vunpack.c.l.b16 %v207
    %v408 = vunpack.c.l.b16 %v208
    %v409 = vunpack.c.l.b16 %v209
    %v410 = vunpack.c.l.b16 %v210
    %v411 = vunpack.c.l.b16 %v211
    %v412 = vunpack.c.l.b16 %v212
    %v413 = vunpack.c.l.b16 %v213
    %v414 = vunpack.c.l.b16 %v214
    %v415 = vunpack.c.l.b16 %v215
    %v416 = vunpack.c.l.b16 %v216
    %v417 = vunpack.c.l.b16 %v217
    %v418 = vunpack.c.l.b16 %v218
    %v419 = vunpack.c.l.b16 %v219
    %v420 = vunpack.c.l.b16 %v220
    %v421 = vunpack.c.l.b16 %v221
    %v422 = vunpack.c.l.b16 %v222
    %v423 = vunpack.c.l.b16 %v223
    %v424 = vunpack.c.l.b16 %v224
    %v425 = vunpack.c.l.b16 %v225
    %v426 = vunpack.c.l.b16 %v226
    %v427 = vunpack.c.l.b16 %v227
    %v428 = vunpack.c.l.b16 %v228
    %v429 = vunpack.c.l.b16 %v229
    %v430 = vunpack.c.l.b16 %v230
    %v431 = vunpack.c.l.b16 %v231
    %v432 = vunpack.c.l.b16 %v232
    %v433 = vunpack.c.l.b16 %v233
    %v434 = vunpack.c.l.b16 %v234
    %v435 = vunpack.c.l.b16 %v235
    %v436 = vunpack.c.l.b16 %v236
    %v437 = vunpack.c.l.b16 %v237
    %v438 = vunpack.c.l.b16 %v238
    %v439 = vunpack.c.l.b16 %v239
    %v440 = vunpack.c.l.b16 %v240
    %v441 = vunpack.c.l.b16 %v241
    %v442 = vunpack.c.l.b16 %v242
    %v443 = vunpack.c.l.b16 %v243
    %v444 = vunpack.c.l.b16 %v244
    %v445 = vunpack.c.l.b16 %v245
    %v446 = vunpack.c.l.b16 %v246
    %v447 = vunpack.c.l.b16 %v247
    %v448 = vunpack.c.l.b16 %v248
    %v449 = vunpack.c.l.b16 %v249
    %v450 = vunpack.c.l.b16 %v250
    %v451 = vunpack.c.l.b16 %v251
    %v452 = vunpack.c.l.b16 %v252
    %v453 = vpack.c.b16 %v356, %v355
    %v454 = vpack.c.b16 %v358, %v357
    %v455 = vpack.c.b16 %v360, %v359
    %v456 = vpack.c.b16 %v362, %v361
    %v457 = vpack.c.b16 %v364, %v363
    %v458 = vpack.c.b16 %v366, %v365
    %v459 = vpack.c.b16 %v368, %v367
    %v460 = vpack.c.b16 %v370, %v369
    %v461 = vpack.c.b16 %v372, %v371
    %v462 = vpack.c.b16 %v374, %v373
    %v463 = vpack.c.b16 %v376, %v375
    %v464 = vpack.c.b16 %v378, %v377
    %v465 = vpack.c.b16 %v380, %v379
    %v466 = vpack.c.b16 %v382, %v381
    %v467 = vpack.c.b16 %v384, %v383
    %v468 = vpack.c.b16 %v386, %v385
    %v469 = vpack.c.b16 %v388, %v387
    %v470 = vpack.c.b16 %v390, %v389
    %v471 = vpack.c.b16 %v392, %v391
    %v472 = vpack.c.b16 %v394, %v393
    %v473 = vpack.c.b16 %v396, %v395
    %v474 = vpack.c.b16 %v398, %v397
    %v475 = vpack.c.b16 %v400, %v399
    %v476 = vpack.c.b16 %v402, %v401
    %v477 = vpack.c.b16 %v404, %v403
    %v478 = vpack.c.b16 %v406, %v405
    %v479 = vpack.c.b16 %v408, %v407
    %v480 = vpack.c.b16 %v410, %v409
    %v481 = vpack.c.b16 %v412, %v411
    %v482 = vpack.c.b16 %v414, %v413
    %v483 = vpack.c.b16 %v416, %v415
    %v484 = vpack.c.b16 %v418, %v417
    %v485 = vpack.c.b16 %v420, %v419
    %v486 = vpack.c.b16 %v422, %v421
    %v487 = vpack.c.b16 %v424, %v423
    %v488 = vpack.c.b16 %v426, %v425
    %v489 = vpack.c.b16 %v428, %v427
    %v490 = vpack.c.b16 %v430, %v429
    %v491 = vpack.c.b16 %v432, %v431
    %v492 = vpack.c.b16 %v434, %v433
    %v493 = vpack.c.b16 %v436, %v435
    %v494 = vpack.c.b16 %v438, %v437
    %v495 = vpack.c.b16 %v440, %v439
    %v496 = vpack.c.b16 %v442, %v441
    %v497 = vpack.c.b16 %v444, %v443
    %v498 = vpack.c.b16 %v446, %v445
    %v499 = vpack.c.b16 %v448, %v447
    %v500 = vpack.c.b16 %v450, %v449
    %v501 = vpack.c.b16 %v452, %v451
    %vm551 = vcmask 130048
    %v553 = vsel %vm551, %v154, 0
    %555 = vmatpush.bf16.msra.mxu0 %v460
    %556 = vmatpush.bf16.msra.mxu0 %v459
    %557 = vmatpush.bf16.msra.mxu0 %v458
    %558 = vmatpush.bf16.msra.mxu0 %v457
    %559 = vmatpush.bf16.msra.mxu0 %v456
    %560 = vmatpush.bf16.msra.mxu0 %v455
    %561 = vmatpush.bf16.msra.mxu0 %v454
    %562 = vmatpush.bf16.msra.mxu0 %v453
    %563 = vmatmul.bf16.gmra.mxu0 %v148
    %v564 = vpop.f32.mrf.mxu0
    %v565 = vadd.f32 %v255, %v564
    %v566 = vpop.f32.mrf.mxu0
    %v567 = vadd.f32 %v255, %v566
    %568 = vdwg.mxu0
    %569 = vmatpush.bf16.msra.mxu0 %v468
    %570 = vmatpush.bf16.msra.mxu0 %v467
    %571 = vmatpush.bf16.msra.mxu0 %v466
    %572 = vmatpush.bf16.msra.mxu0 %v465
    %573 = vmatpush.bf16.msra.mxu0 %v464
    %574 = vmatpush.bf16.msra.mxu0 %v463
    %575 = vmatpush.bf16.msra.mxu0 %v462
    %576 = vmatpush.bf16.msra.mxu0 %v461
    %577 = vmatmul.bf16.gmra.mxu0 %v149
    %v578 = vpop.f32.mrf.mxu0
    %v579 = vadd.f32 %v565, %v578
    %v580 = vpop.f32.mrf.mxu0
    %v581 = vadd.f32 %v567, %v580
    %582 = vdwg.mxu0
    %583 = vmatpush.bf16.msra.mxu0 %v476
    %584 = vmatpush.bf16.msra.mxu0 %v475
    %585 = vmatpush.bf16.msra.mxu0 %v474
    %586 = vmatpush.bf16.msra.mxu0 %v473
    %587 = vmatpush.bf16.msra.mxu0 %v472
    %588 = vmatpush.bf16.msra.mxu0 %v471
    %589 = vmatpush.bf16.msra.mxu0 %v470
    %590 = vmatpush.bf16.msra.mxu0 %v469
    %591 = vmatmul.bf16.gmra.mxu0 %v150
    %v592 = vpop.f32.mrf.mxu0
    %v593 = vadd.f32 %v579, %v592
    %v594 = vpop.f32.mrf.mxu0
    %v595 = vadd.f32 %v581, %v594
    %596 = vdwg.mxu0
    %597 = vmatpush.bf16.msra.mxu0 %v484
    %598 = vmatpush.bf16.msra.mxu0 %v483
    %599 = vmatpush.bf16.msra.mxu0 %v482
    %600 = vmatpush.bf16.msra.mxu0 %v481
    %601 = vmatpush.bf16.msra.mxu0 %v480
    %602 = vmatpush.bf16.msra.mxu0 %v479
    %603 = vmatpush.bf16.msra.mxu0 %v478
    %604 = vmatpush.bf16.msra.mxu0 %v477
    %605 = vmatmul.bf16.gmra.mxu0 %v151
    %v606 = vpop.f32.mrf.mxu0
    %v607 = vadd.f32 %v593, %v606
    %v608 = vpop.f32.mrf.mxu0
    %v609 = vadd.f32 %v595, %v608
    %610 = vdwg.mxu0
    %611 = vmatpush.bf16.msra.mxu0 %v492
    %612 = vmatpush.bf16.msra.mxu0 %v491
    %613 = vmatpush.bf16.msra.mxu0 %v490
    %614 = vmatpush.bf16.msra.mxu0 %v489
    %615 = vmatpush.bf16.msra.mxu0 %v488
    %616 = vmatpush.bf16.msra.mxu0 %v487
    %617 = vmatpush.bf16.msra.mxu0 %v486
    %618 = vmatpush.bf16.msra.mxu0 %v485
    %619 = vmatmul.bf16.gmra.mxu0 %v152
    %v620 = vpop.f32.mrf.mxu0
    %v621 = vadd.f32 %v607, %v620
    %v622 = vpop.f32.mrf.mxu0
    %v623 = vadd.f32 %v609, %v622
    %624 = vdwg.mxu0
    %625 = vmatpush.bf16.msra.mxu0 %v500
    %626 = vmatpush.bf16.msra.mxu0 %v499
    %627 = vmatpush.bf16.msra.mxu0 %v498
    %628 = vmatpush.bf16.msra.mxu0 %v497
    %629 = vmatpush.bf16.msra.mxu0 %v496
    %630 = vmatpush.bf16.msra.mxu0 %v495
    %631 = vmatpush.bf16.msra.mxu0 %v494
    %632 = vmatpush.bf16.msra.mxu0 %v493
    %633 = vmatmul.bf16.gmra.mxu0 %v153
    %v634 = vpop.f32.mrf.mxu0
    %v635 = vadd.f32 %v621, %v634
    %v636 = vpop.f32.mrf.mxu0
    %v637 = vadd.f32 %v623, %v636
    %638 = vdwg.mxu0
    %639 = vmatpush.bf16.msra.mxu0 0
    %640 = vmatpush.bf16.msra.mxu0 0
    %641 = vmatpush.bf16.msra.mxu0 0
    %642 = vmatpush.bf16.msra.mxu0 0
    %643 = vmatpush.bf16.msra.mxu0 0
    %644 = vmatpush.bf16.msra.mxu0 0
    %645 = vmatpush.bf16.msra.mxu0 0
    %646 = vmatpush.bf16.msra.mxu0 %v501
    %647 = vmatmul.bf16.gmra.mxu0 %v553
    %v648 = vpop.f32.mrf.mxu0
    %v649 = vadd.f32 %v635, %v648
    %v650 = vpop.f32.mrf.mxu0
    %v651 = vadd.f32 %v637, %v650
    %652 = vdwg.mxu0
    %v653 = vmax.f32 %v649, 0.0
    %v654 = vmax.f32 %v651, 0.0
    %v655 = vpack.c.bf16 %v654, %v653
    %v656 = vld [vmem:[#allocation7] sm:$0xf]
    %v657 = vld [vmem:[#allocation7 + $0x4] sm:$0xf]
    %v658 = vld [vmem:[#allocation7 + $0x8] sm:$0xf]
    %v659 = vld [vmem:[#allocation7 + $0xc] sm:$0xf]
    %v660 = vld [vmem:[#allocation7 + $0x10] sm:$0xf]
    %v661 = vld [vmem:[#allocation7 + $0x14] sm:$0xf]
    %v662 = vld [vmem:[#allocation7 + $0x18] sm:$0xf]
    %v663 = vld [vmem:[#allocation7 + $0x1c] sm:$0xf]
    %v664 = vld [vmem:[#allocation7 + $0x20] sm:$0xf]
    %v665 = vld [vmem:[#allocation7 + $0x24] sm:$0xf]
    %v666 = vld [vmem:[#allocation7 + $0x28] sm:$0xf]
    %v667 = vld [vmem:[#allocation7 + $0x2c] sm:$0xf]
    %v668 = vld [vmem:[#allocation7 + $0x30] sm:$0xf]
    %v669 = vld [vmem:[#allocation7 + $0x34] sm:$0xf]
    %v670 = vld [vmem:[#allocation7 + $0x38] sm:$0xf]
    %v671 = vld [vmem:[#allocation7 + $0x3c] sm:$0xf]
    %v672 = vld [vmem:[%s4] sm:$0x1]
    %v674 = vperm.slane %v672, 0
    %v692 = vunpack.c.l.b16 %v656
    %v693 = vunpack.c.l.b16 %v657
    %v694 = vunpack.c.l.b16 %v658
    %v695 = vunpack.c.l.b16 %v659
    %v696 = vunpack.c.l.b16 %v660
    %v697 = vunpack.c.l.b16 %v661
    %v698 = vunpack.c.l.b16 %v662
    %v699 = vunpack.c.l.b16 %v663
    %v700 = vunpack.c.l.b16 %v664
    %v701 = vunpack.c.l.b16 %v665
    %v702 = vunpack.c.l.b16 %v666
    %v703 = vunpack.c.l.b16 %v667
    %v704 = vunpack.c.l.b16 %v668
    %v705 = vunpack.c.l.b16 %v669
    %v706 = vunpack.c.l.b16 %v670
    %v707 = vunpack.c.l.b16 %v671
    %v708 = vpack.c.b16 %v693, %v692
    %v709 = vpack.c.b16 %v695, %v694
    %v710 = vpack.c.b16 %v697, %v696
    %v711 = vpack.c.b16 %v699, %v698
    %v712 = vpack.c.b16 %v701, %v700
    %v713 = vpack.c.b16 %v703, %v702
    %v714 = vpack.c.b16 %v705, %v704
    %v715 = vpack.c.b16 %v707, %v706
    %724 = vmatpush.bf16.msra.mxu0 %v715
    %725 = vmatpush.bf16.msra.mxu0 %v714
    %726 = vmatpush.bf16.msra.mxu0 %v713
    %727 = vmatpush.bf16.msra.mxu0 %v712
    %728 = vmatpush.bf16.msra.mxu0 %v711
    %729 = vmatpush.bf16.msra.mxu0 %v710
    %730 = vmatpush.bf16.msra.mxu0 %v709
    %731 = vmatpush.bf16.msra.mxu0 %v708
    %732 = vmatmul.bf16.gmra.mxu0 %v655
    %v733 = vpop.f32.mrf.mxu0
    %v734 = vadd.f32 %v674, %v733
    %v735 = vpop.f32.mrf.mxu0
    %v736 = vadd.f32 %v674, %v735
    %737 = vdwg.mxu0
    %v738 = vmax.f32 %v734, 0.0
    %v739 = vmax.f32 %v736, 0.0
    %v740 = vpack.c.bf16 %v739, %v738
    %v741 = vld [vmem:[#allocation8] sm:$0xf]
    %v742 = vld [vmem:[#allocation8 + $0x4] sm:$0xf]
    %v743 = vld [vmem:[#allocation8 + $0x8] sm:$0xf]
    %v744 = vld [vmem:[#allocation8 + $0xc] sm:$0xf]
    %v745 = vld [vmem:[#allocation8 + $0x10] sm:$0xf]
    %v746 = vld [vmem:[#allocation8 + $0x14] sm:$0xf]
    %v747 = vld [vmem:[#allocation8 + $0x18] sm:$0xf]
    %v748 = vld [vmem:[#allocation8 + $0x1c] sm:$0xf]
    %v749 = vld [vmem:[#allocation8 + $0x20] sm:$0xf]
    %v750 = vld [vmem:[#allocation8 + $0x24] sm:$0xf]
    %v751 = vld [vmem:[#allocation8 + $0x28] sm:$0xf]
    %v752 = vld [vmem:[#allocation8 + $0x2c] sm:$0xf]
    %v753 = vld [vmem:[#allocation8 + $0x30] sm:$0xf]
    %v754 = vld [vmem:[#allocation8 + $0x34] sm:$0xf]
    %v755 = vld [vmem:[#allocation8 + $0x38] sm:$0xf]
    %v756 = vld [vmem:[#allocation8 + $0x3c] sm:$0xf]
    %v757 = vld [vmem:[%s6] sm:$0x1]
    %v759 = vperm.slane %v757, 0
    %v777 = vunpack.c.l.b16 %v741
    %v778 = vunpack.c.l.b16 %v742
    %v779 = vunpack.c.l.b16 %v743
    %v780 = vunpack.c.l.b16 %v744
    %v781 = vunpack.c.l.b16 %v745
    %v782 = vunpack.c.l.b16 %v746
    %v783 = vunpack.c.l.b16 %v747
    %v784 = vunpack.c.l.b16 %v748
    %v785 = vunpack.c.l.b16 %v749
    %v786 = vunpack.c.l.b16 %v750
    %v787 = vunpack.c.l.b16 %v751
    %v788 = vunpack.c.l.b16 %v752
    %v789 = vunpack.c.l.b16 %v753
    %v790 = vunpack.c.l.b16 %v754
    %v791 = vunpack.c.l.b16 %v755
    %v792 = vunpack.c.l.b16 %v756
    %v793 = vpack.c.b16 %v778, %v777
    %v794 = vpack.c.b16 %v780, %v779
    %v795 = vpack.c.b16 %v782, %v781
    %v796 = vpack.c.b16 %v784, %v783
    %v797 = vpack.c.b16 %v786, %v785
    %v798 = vpack.c.b16 %v788, %v787
    %v799 = vpack.c.b16 %v790, %v789
    %v800 = vpack.c.b16 %v792, %v791
    %809 = vmatpush.bf16.msra.mxu0 %v800
    %810 = vmatpush.bf16.msra.mxu0 %v799
    %811 = vmatpush.bf16.msra.mxu0 %v798
    %812 = vmatpush.bf16.msra.mxu0 %v797
    %813 = vmatpush.bf16.msra.mxu0 %v796
    %814 = vmatpush.bf16.msra.mxu0 %v795
    %815 = vmatpush.bf16.msra.mxu0 %v794
    %816 = vmatpush.bf16.msra.mxu0 %v793
    %817 = vmatmul.bf16.gmra.mxu0 %v740
    %v818 = vpop.f32.mrf.mxu0
    %v819 = vadd.f32 %v759, %v818
    %v820 = vpop.f32.mrf.mxu0
    %v821 = vadd.f32 %v759, %v820
    %822 = vdwg.mxu0
    %v823 = vmax.f32 %v819, 0.0
    %v824 = vmax.f32 %v821, 0.0
    %v825 = vpack.c.bf16 %v824, %v823
    %v826 = vld [vmem:[#allocation10] sm:$0xf]
    %v827 = vld [vmem:[#allocation10 + $0x4] sm:$0xf]
    %v828 = vld [vmem:[#allocation10 + $0x8] sm:$0xf]
    %v829 = vld [vmem:[#allocation10 + $0xc] sm:$0xf]
    %v830 = vld [vmem:[#allocation10 + $0x10] sm:$0xf]
    %v831 = vld [vmem:[#allocation10 + $0x14] sm:$0xf]
    %v832 = vld [vmem:[#allocation10 + $0x18] sm:$0xf]
    %v833 = vld [vmem:[#allocation10 + $0x1c] sm:$0xf]
    %v834 = vld [vmem:[#allocation10 + $0x20] sm:$0xf]
    %v835 = vld [vmem:[#allocation10 + $0x24] sm:$0xf]
    %v836 = vld [vmem:[#allocation10 + $0x28] sm:$0xf]
    %v837 = vld [vmem:[#allocation10 + $0x2c] sm:$0xf]
    %v838 = vld [vmem:[#allocation10 + $0x30] sm:$0xf]
    %v839 = vld [vmem:[#allocation10 + $0x34] sm:$0xf]
    %v840 = vld [vmem:[#allocation10 + $0x38] sm:$0xf]
    %v841 = vld [vmem:[#allocation10 + $0x3c] sm:$0xf]
    %v842 = vld [vmem:[%s8] sm:$0x1]
    %v844 = vperm.slane %v842, 0
    %v862 = vunpack.c.l.b16 %v826
    %v863 = vunpack.c.l.b16 %v827
    %v864 = vunpack.c.l.b16 %v828
    %v865 = vunpack.c.l.b16 %v829
    %v866 = vunpack.c.l.b16 %v830
    %v867 = vunpack.c.l.b16 %v831
    %v868 = vunpack.c.l.b16 %v832
    %v869 = vunpack.c.l.b16 %v833
    %v870 = vunpack.c.l.b16 %v834
    %v871 = vunpack.c.l.b16 %v835
    %v872 = vunpack.c.l.b16 %v836
    %v873 = vunpack.c.l.b16 %v837
    %v874 = vunpack.c.l.b16 %v838
    %v875 = vunpack.c.l.b16 %v839
    %v876 = vunpack.c.l.b16 %v840
    %v877 = vunpack.c.l.b16 %v841
    %v878 = vpack.c.b16 %v863, %v862
    %v879 = vpack.c.b16 %v865, %v864
    %v880 = vpack.c.b16 %v867, %v866
    %v881 = vpack.c.b16 %v869, %v868
    %v882 = vpack.c.b16 %v871, %v870
    %v883 = vpack.c.b16 %v873, %v872
    %v884 = vpack.c.b16 %v875, %v874
    %v885 = vpack.c.b16 %v877, %v876
    %894 = vmatpush.bf16.msra.mxu0 %v885
    %895 = vmatpush.bf16.msra.mxu0 %v884
    %896 = vmatpush.bf16.msra.mxu0 %v883
    %897 = vmatpush.bf16.msra.mxu0 %v882
    %898 = vmatpush.bf16.msra.mxu0 %v881
    %899 = vmatpush.bf16.msra.mxu0 %v880
    %900 = vmatpush.bf16.msra.mxu0 %v879
    %901 = vmatpush.bf16.msra.mxu0 %v878
    %902 = vmatmul.bf16.gmra.mxu0 %v825
    %v903 = vpop.f32.mrf.mxu0
    %v904 = vadd.f32 %v844, %v903
    %v905 = vpop.f32.mrf.mxu0
    %v906 = vadd.f32 %v844, %v905
    %907 = vdwg.mxu0
    %v908 = vmax.f32 %v904, 0.0
    %v909 = vmax.f32 %v906, 0.0
    %v910 = vpack.c.bf16 %v909, %v908
    %v911 = vld [vmem:[#allocation11] sm:$0xf]
    %v912 = vld [vmem:[#allocation11 + $0x4] sm:$0xf]
    %v913 = vld [vmem:[#allocation11 + $0x8] sm:$0xf]
    %v914 = vld [vmem:[#allocation11 + $0xc] sm:$0xf]
    %v915 = vld [vmem:[#allocation11 + $0x10] sm:$0xf]
    %v916 = vld [vmem:[#allocation11 + $0x14] sm:$0xf]
    %v917 = vld [vmem:[#allocation11 + $0x18] sm:$0xf]
    %v918 = vld [vmem:[#allocation11 + $0x1c] sm:$0xf]
    %v919 = vld [vmem:[#allocation11 + $0x20] sm:$0xf]
    %v920 = vld [vmem:[#allocation11 + $0x24] sm:$0xf]
    %v921 = vld [vmem:[#allocation11 + $0x28] sm:$0xf]
    %v922 = vld [vmem:[#allocation11 + $0x2c] sm:$0xf]
    %v923 = vld [vmem:[#allocation11 + $0x30] sm:$0xf]
    %v924 = vld [vmem:[#allocation11 + $0x34] sm:$0xf]
    %v925 = vld [vmem:[#allocation11 + $0x38] sm:$0xf]
    %v926 = vld [vmem:[#allocation11 + $0x3c] sm:$0xf]
    %v927 = vld [vmem:[%s10] sm:$0x1]
    %v929 = vperm.slane %v927, 0
    %v947 = vunpack.c.l.b16 %v911
    %v948 = vunpack.c.l.b16 %v912
    %v949 = vunpack.c.l.b16 %v913
    %v950 = vunpack.c.l.b16 %v914
    %v951 = vunpack.c.l.b16 %v915
    %v952 = vunpack.c.l.b16 %v916
    %v953 = vunpack.c.l.b16 %v917
    %v954 = vunpack.c.l.b16 %v918
    %v955 = vunpack.c.l.b16 %v919
    %v956 = vunpack.c.l.b16 %v920
    %v957 = vunpack.c.l.b16 %v921
    %v958 = vunpack.c.l.b16 %v922
    %v959 = vunpack.c.l.b16 %v923
    %v960 = vunpack.c.l.b16 %v924
    %v961 = vunpack.c.l.b16 %v925
    %v962 = vunpack.c.l.b16 %v926
    %v963 = vpack.c.b16 %v948, %v947
    %v964 = vpack.c.b16 %v950, %v949
    %v965 = vpack.c.b16 %v952, %v951
    %v966 = vpack.c.b16 %v954, %v953
    %v967 = vpack.c.b16 %v956, %v955
    %v968 = vpack.c.b16 %v958, %v957
    %v969 = vpack.c.b16 %v960, %v959
    %v970 = vpack.c.b16 %v962, %v961
    %979 = vmatpush.bf16.msra.mxu0 %v970
    %980 = vmatpush.bf16.msra.mxu0 %v969
    %981 = vmatpush.bf16.msra.mxu0 %v968
    %982 = vmatpush.bf16.msra.mxu0 %v967
    %983 = vmatpush.bf16.msra.mxu0 %v966
    %984 = vmatpush.bf16.msra.mxu0 %v965
    %985 = vmatpush.bf16.msra.mxu0 %v964
    %986 = vmatpush.bf16.msra.mxu0 %v963
    %987 = vmatmul.bf16.gmra.mxu0 %v910
    %v988 = vpop.f32.mrf.mxu0
    %v989 = vadd.f32 %v929, %v988
    %v990 = vpop.f32.mrf.mxu0
    %v991 = vadd.f32 %v929, %v990
    %992 = vdwg.mxu0
    %v993 = vlaneseq
    %v994 = vand.u32 %v993, 127
    %vm995 = vcmp.lt.s32.totalorder %v994, 10
    %v996 = vsel %vm995, %v989, -1e+30
    %v997 = vsel %vm995, %v991, -1e+30
    %998 = vmax.xlane.f32.xlu0 %v996
    %v999 = vpop.xlane.xlu0 %998
    %1000 = vmax.xlane.f32.xlu0 %v997
    %v1001 = vpop.xlane.xlu0 %1000
    %v1002 = vsub.f32 %v996, %v999
    %v1003 = vsub.f32 %v997, %v1001
    %v1004 = vmul.f32 %v1002, 1.442695
    %v1005 = vpow.pop %v1004
    %v1006 = vmul.f32 %v1003, 1.442695
    %v1007 = vpow.pop %v1006
    %1008 = vadd.xlane.f32.xlu0 %v1005
    %v1009 = vpop.xlane.xlu0 %1008
    %1010 = vadd.xlane.f32.xlu0 %v1007
    %v1011 = vpop.xlane.xlu0 %1010
    %v1012 = vlog2.pop %v1009
    %v1013 = vmul.f32 %v1012, 0.6931472
    %v1014 = vlog2.pop %v1011
    %v1015 = vmul.f32 %v1014, 0.6931472
    %v1016 = vsub.f32 %v1002, %v1013
    %v1017 = vsub.f32 %v1003, %v1015
    %v1018 = vsel %vm995, %v1016, 0.0
    %v1019 = vsel %vm995, %v1017, 0.0
    %v1020 = vpack.c.bf16 %v1018, %v1018
    %v1021 = vpack.c.bf16 %v1019, %v1019
    %1022 = vst [vmem:[#allocation13] sm:$0xf] %v1020
    %1023 = vst [vmem:[#allocation13 + $0x4] sm:$0xf] %v1021
    // Predicated region
    $region70: #{tpu_custom_call.1} parent=1 // pred_check
      _
    $region71: #{tpu_custom_call.1} parent=1 // pred_check_branch
      %1025 = sbr.rel (0) target = $region73
    $region72: #{tpu_custom_call.1} parent=1 // pred_region
      %1027 = vsyncadd [#allocation4], 0
      %s1028 = sshll.u32 [#allocation13], 4
      %s1029 = int_to_ptr.vmem [resolvable:$true] %s1028
      %s1030 = sshll.u32 %s11, 4
      %s1031 = int_to_ptr.hbm [resolvable:$true] %s1030
      %1036 = dma.vmem_to_hbm [thread:$0]  %s1029, 128, %s1031, [#allocation4], 64, 64, 4
    $region73: #{tpu_custom_call.1} parent=1 // pred_fallthru
      _
    // Predicated region
    $region74: #{tpu_custom_call.1} parent=1 // pred_check
      _
    $region75: #{tpu_custom_call.1} parent=1 // pred_check_branch
      %1038 = sbr.rel (0) target = $region77
    $region76: #{tpu_custom_call.1} parent=1 // pred_region
      %1040 = dma.done [#allocation4], 128
    $region77: #{tpu_custom_call.1} parent=1 // pred_fallthru
      _
    %1041 = vsyncpa [#allocation3], 1
    %1042 = vsyncpa [#allocation6], 1
    %1043 = vsyncpa [#allocation9], 1
    %1044 = vsyncpa [#allocation12], 1
    %1045 = vsyncpa [#allocation4], 1

</llo_original>
